<compile_context>
chip_gen: v6e
topology: v6e:2x2x1
jax: 0.10.0
libtpu: 0.0.40
codegen_flags: <defaults>
</compile_context>

<pallas_src>
import jax
import jax.numpy as jnp
from jax import lax
from jax.experimental import pallas as pl
from jax.experimental.pallas import tpu as pltpu

# Hyperparameters (small, consistent with the module's __init__).
IN_DIM = 16      # in_dim
FEAT_DIM = 8     # feat_embed_size
OUT_DIM = 32     # out_dim (per head)
NUM_HEADS = 4    # num_heads
N_TOKENS = 8     # number of token nodes

NEG_SLOPE = 0.01   # F.leaky_relu default
NEG_INF = -1e30


def tgat_kernel(h_ref, wfc_ref, wdst_ref, ssrc_ref, mfeat_ref, dep_ref,
                mask_ref, blkmask_ref, out_ref):
    # Layouts (T = dst rows of this tile == N, N = src rows, H = heads, D = out_dim):
    #   h_ref       [N, IN]      token features (sources == dsts since TILE == N)
    #   wfc_ref     [IN, H*D]    fc.weight^T (all heads stacked on the lane axis)
    #   wdst_ref    [IN, H*N]    fc folded into w_dst, tiled per src column
    #   ssrc_ref    [1, H*N]     precomputed w_src . z[src, h]   (col = h*N + src)
    #   mfeat_ref   [N*F, H*N]   structured feat weight: [src*F+f, h*N+src'] = d(src,src')*V[f,h]
    #   dep_ref     [T, N*F]     dep_emb reshaped (dst, src*F+f)
    #   mask_ref    [T, H*N]     adjacency mask tiled per head (col = h*N + src)
    #   blkmask_ref [H*N, H*D]   block-diagonal ones
    #   out_ref     [T, H*D]     per-head outputs concatenated along lanes
    h_all = h_ref[...]
    blkmask = blkmask_ref[...]

    # fc(h): one lane-full MXU matmul for all heads; then block-diagonal per-head z
    # (row h*N+src carries z_h[src] in head h's column block).
    z_src = jnp.dot(h_all, wfc_ref[...], preferred_element_type=jnp.float32)   # [N, H*D]
    zblk = jnp.concatenate([z_src] * NUM_HEADS, axis=0) * blkmask              # [H*N, H*D]

    # Attention logits, heads stacked along the lane axis (column index = h*N + src).
    # s_src is dst-invariant and precomputed in the wrapper; fc is folded into the
    # dst weight so s_dst is a K=IN contraction instead of K=H*D.
    s_dst = jnp.dot(h_all, wdst_ref[...], preferred_element_type=jnp.float32)      # [T, H*N]
    s_feat = jnp.dot(dep_ref[...], mfeat_ref[...], preferred_element_type=jnp.float32)  # [T, H*N]

    e = ssrc_ref[...] + s_dst + s_feat
    e = jnp.where(e >= 0.0, e, NEG_SLOPE * e)          # leaky_relu
    e = jnp.where(mask_ref[...] > 0.0, e, NEG_INF)     # mask non-edges (single mask op)

    # Masked softmax over all heads at once.  The per-dst-row max (over all heads'
    # columns) is a valid per-head shift; masked entries underflow to 0 in exp.
    m = jnp.max(e, axis=1, keepdims=True)              # [T, 1]
    p = jnp.exp(e - m)                                 # [T, H*N]

    # Unnormalized attention*V plus per-head denominators broadcast over each head's
    # D lanes (reuses blkmask -> no extra constants); single EUP reciprocal and one
    # lane-dense 128-wide unmasked store.
    num = jnp.dot(p, zblk, preferred_element_type=jnp.float32)       # [T, H*D]
    den = jnp.dot(p, blkmask, preferred_element_type=jnp.float32)    # [T, H*D]
    out_ref[...] = num * pl.reciprocal(jnp.maximum(den, 1e-20), approx=True)


def tgat_forward(h, adj, dep_emb, fc_w, feat_w, attn_w):
    """h: [N, IN]; adj: [N, N]; dep_emb: [N, N, F]; weights in PyTorch layout."""
    N, IN = h.shape
    H, D, F = NUM_HEADS, OUT_DIM, FEAT_DIM
    HD = H * D
    TILE = N                      # dst-row tile; kernel assumes TILE == N
    assert TILE == N and N % 8 == 0

    hp = lax.Precision.HIGHEST    # tiny one-off wrapper constants: pay for accuracy

    # ---- wrapper-side parameter / layout plumbing (built once) ----
    wfc_t = fc_w.T                                                   # [IN, HD]
    w_src = attn_w[0, 0:D]
    w_dst = attn_w[0, D:2 * D]
    w_feat = attn_w[0, 2 * D:3 * D]

    wfc_heads = wfc_t.reshape(IN, H, D)
    # Fold fc into the src/dst attention vectors (one K=IN contraction each).
    wsrc_fold = jnp.einsum('ihd,d->ih', wfc_heads, w_src, precision=hp)   # [IN, H]
    wdst_head = jnp.einsum('ihd,d->ih', wfc_heads, w_dst, precision=hp)   # [IN, H]
    wdst_fold = jnp.repeat(wdst_head, N, axis=1)                          # [IN, H*N]

    # dst-invariant s_src row: column h*N+src = w_src . z[src, h].
    s_src_row = jnp.dot(h, wsrc_fold, precision=hp).T.reshape(1, H * N)   # [1, H*N]

    # Fuse feat_fc with the attention dot: V[f, h] = sum_d w_feat[d] * feat_w[h*D+d, f]
    V = (feat_w.reshape(H, D, F) * w_feat[None, :, None]).sum(axis=1).T   # [F, H]
    m_feat = (jnp.eye(N, dtype=jnp.float32)[:, None, None, :]
              * V[None, :, :, None]).reshape(N * F, H * N)                # [N*F, H*N]
    dep3 = dep_emb.reshape(N, N * F)                                      # [N, N*F]

    mask_ls = jnp.tile(adj, (1, H))                                       # [N, H*N]
    eye_h = jnp.eye(H, dtype=jnp.float32)
    blkmask = jnp.kron(eye_h, jnp.ones((N, D), jnp.float32))              # [H*N, HD]

    grid = (N // TILE,)
    out_flat = pl.pallas_call(
        tgat_kernel,
        out_shape=jax.ShapeDtypeStruct((N, HD), jnp.float32),
        grid=grid,
        in_specs=[
            pl.BlockSpec((N, IN), lambda i: (0, 0)),          # token features (once)
            pl.BlockSpec(wfc_t.shape, lambda i: (0, 0)),
            pl.BlockSpec(wdst_fold.shape, lambda i: (0, 0)),
            pl.BlockSpec(s_src_row.shape, lambda i: (0, 0)),
            pl.BlockSpec(m_feat.shape, lambda i: (0, 0)),
            pl.BlockSpec((TILE, N * F), lambda i: (i, 0)),    # dep rows of dst tile
            pl.BlockSpec((TILE, H * N), lambda i: (i, 0)),    # mask rows of dst tile
            pl.BlockSpec(blkmask.shape, lambda i: (0, 0)),
        ],
        out_specs=pl.BlockSpec((TILE, HD), lambda i: (i, 0)),
        compiler_params=pltpu.CompilerParams(dimension_semantics=("parallel",)),
    )(h, wfc_t, wdst_fold, s_src_row, m_feat, dep3, mask_ls, blkmask)

    # [N, H*D] -> [N, num_heads, out_dim], matching PyTorch's returned h[token_node_ids]
    return out_flat.reshape(N, H, D)


def tgat_reference(h, adj, dep_emb, fc_w, feat_w, attn_w):
    """Pure-JAX gold standard of the PyTorch/DGL forward (dense-graph form)."""
    N = h.shape[0]
    hp = lax.Precision.HIGHEST
    z = jnp.dot(h, fc_w.T, precision=hp).reshape(N, NUM_HEADS, OUT_DIM)
    feat = jnp.dot(dep_emb.reshape(N * N, FEAT_DIM), feat_w.T,
                   precision=hp).reshape(N, N, NUM_HEADS, OUT_DIM)
    z_src = jnp.broadcast_to(z[None, :, :, :], (N, N, NUM_HEADS, OUT_DIM))
    z_dst = jnp.broadcast_to(z[:, None, :, :], (N, N, NUM_HEADS, OUT_DIM))
    z2 = jnp.concatenate([z_src, z_dst, feat], axis=-1)       # [dst, src, H, 3D]
    a = jnp.einsum('dshk,k->dsh', z2, attn_w[0], precision=hp)
    e = jnp.where(a >= 0, a, NEG_SLOPE * a)
    mask = (adj > 0)[:, :, None]
    e = jnp.where(mask, e, NEG_INF)
    e_max = jnp.max(e, axis=1, keepdims=True)
    p = jnp.exp(e - e_max) * mask.astype(jnp.float32)
    alpha = p / jnp.sum(p, axis=1, keepdims=True)
    return jnp.einsum('dsh,shk->dhk', alpha, z, precision=hp)


if __name__ == "__main__":
    key = jax.random.PRNGKey(0)
    k1, k2, k3, k4, k5 = jax.random.split(key, 5)

    HD = NUM_HEADS * OUT_DIM
    gain = 2.0 ** 0.5  # nn.init.calculate_gain('relu')
    # xavier_normal_: std = gain * sqrt(2 / (fan_in + fan_out))
    fc_w = gain * (2.0 / (IN_DIM + HD)) ** 0.5 * jax.random.normal(
        k1, (HD, IN_DIM), jnp.float32)
    feat_w = gain * (2.0 / (FEAT_DIM + HD)) ** 0.5 * jax.random.normal(
        k2, (HD, FEAT_DIM), jnp.float32)
    attn_w = gain * (2.0 / (3 * OUT_DIM + 1)) ** 0.5 * jax.random.normal(
        k3, (1, 3 * OUT_DIM), jnp.float32)

    # Inputs: token features, per-edge dependency embeddings, dense adjacency.
    h = jax.random.normal(k4, (N_TOKENS, IN_DIM), jnp.float32)
    dep_emb = jax.random.normal(k5, (N_TOKENS, N_TOKENS, FEAT_DIM), jnp.float32)
    eye = jnp.eye(N_TOKENS, dtype=jnp.float32)
    ring = jnp.roll(eye, shift=1, axis=0)          # edge from token i -> token i+1
    adj = jnp.clip(eye + ring, 0.0, 1.0)           # self-loops + ring => every node has in-edges

    out = tgat_forward(h, adj, dep_emb, fc_w, feat_w, attn_w)
    out = jax.block_until_ready(out)

    ref = tgat_reference(h, adj, dep_emb, fc_w, feat_w, attn_w)
    assert out.shape == (N_TOKENS, NUM_HEADS, OUT_DIM)
    assert jnp.allclose(out, ref, rtol=1e-2, atol=1e-2), float(
        jnp.max(jnp.abs(out - ref)))
    print("KERNEL_OK")
</pallas_src>

<mosaic_0001>
module attributes {stable_mosaic.version = 11 : i64} {
  func.func @tgat_kernel(%arg0: i32, %arg1: memref<8x16xf32, #tpu.memory_space<vmem>>, %arg2: memref<16x128xf32, #tpu.memory_space<vmem>>, %arg3: memref<16x32xf32, #tpu.memory_space<vmem>>, %arg4: memref<1x32xf32, #tpu.memory_space<vmem>>, %arg5: memref<64x32xf32, #tpu.memory_space<vmem>>, %arg6: memref<8x64xf32, #tpu.memory_space<vmem>>, %arg7: memref<8x32xf32, #tpu.memory_space<vmem>>, %arg8: memref<32x128xf32, #tpu.memory_space<vmem>>, %arg9: memref<8x128xf32, #tpu.memory_space<vmem>>) attributes {dimension_semantics = [#tpu.dimension_semantics<parallel>], iteration_bounds = array<i64: 1>, scalar_prefetch = 0 : i64, scratch_operands = 0 : i64, tpu.core_type = #tpu.core_type<tc>, window_params = [{pipeline_mode = #tpu.pipeline_mode<synchronous>, transform_indices = @transform_0, window_bounds = array<i64: 8, 16>}, {pipeline_mode = #tpu.pipeline_mode<synchronous>, transform_indices = @transform_1, window_bounds = array<i64: 16, 128>}, {pipeline_mode = #tpu.pipeline_mode<synchronous>, transform_indices = @transform_2, window_bounds = array<i64: 16, 32>}, {pipeline_mode = #tpu.pipeline_mode<synchronous>, transform_indices = @transform_3, window_bounds = array<i64: 1, 32>}, {pipeline_mode = #tpu.pipeline_mode<synchronous>, transform_indices = @transform_4, window_bounds = array<i64: 64, 32>}, {transform_indices = @transform_5, window_bounds = array<i64: 8, 64>}, {transform_indices = @transform_6, window_bounds = array<i64: 8, 32>}, {pipeline_mode = #tpu.pipeline_mode<synchronous>, transform_indices = @transform_7, window_bounds = array<i64: 32, 128>}, {transform_indices = @transform_8, window_bounds = array<i64: 8, 128>}]} {
    %c0 = arith.constant 0 : index
    %c0_0 = arith.constant 0 : index
    %0 = vector.load %arg1[%c0, %c0_0] : memref<8x16xf32, #tpu.memory_space<vmem>>, vector<8x16xf32>
    %c0_1 = arith.constant 0 : index
    %c0_2 = arith.constant 0 : index
    %1 = vector.load %arg8[%c0_1, %c0_2] : memref<32x128xf32, #tpu.memory_space<vmem>>, vector<32x128xf32>
    %c0_3 = arith.constant 0 : index
    %c0_4 = arith.constant 0 : index
    %2 = vector.load %arg2[%c0_3, %c0_4] : memref<16x128xf32, #tpu.memory_space<vmem>>, vector<16x128xf32>
    %cst = arith.constant dense<0.000000e+00> : vector<8x128xf32>
    %3 = tpu.matmul %0, %2, %cst {dimension_numbers = #tpu.dot_dimension_numbers<[1], [0], [0], [1], [0, 0, 1, 1], [], []>} : vector<8x16xf32>, vector<16x128xf32>, vector<8x128xf32> -> vector<8x128xf32>
    %4 = tpu.concatenate %3, %3, %3, %3 in 0 : vector<8x128xf32>, vector<8x128xf32>, vector<8x128xf32>, vector<8x128xf32> -> vector<32x128xf32>
    %5 = arith.mulf %4, %1 : vector<32x128xf32>
    %c0_5 = arith.constant 0 : index
    %c0_6 = arith.constant 0 : index
    %6 = vector.load %arg3[%c0_5, %c0_6] : memref<16x32xf32, #tpu.memory_space<vmem>>, vector<16x32xf32>
    %cst_7 = arith.constant dense<0.000000e+00> : vector<8x32xf32>
    %7 = tpu.matmul %0, %6, %cst_7 {dimension_numbers = #tpu.dot_dimension_numbers<[1], [0], [0], [1], [0, 0, 1, 1], [], []>} : vector<8x16xf32>, vector<16x32xf32>, vector<8x32xf32> -> vector<8x32xf32>
    %c0_8 = arith.constant 0 : index
    %c0_9 = arith.constant 0 : index
    %8 = vector.load %arg6[%c0_8, %c0_9] : memref<8x64xf32, #tpu.memory_space<vmem>>, vector<8x64xf32>
    %c0_10 = arith.constant 0 : index
    %c0_11 = arith.constant 0 : index
    %9 = vector.load %arg5[%c0_10, %c0_11] : memref<64x32xf32, #tpu.memory_space<vmem>>, vector<64x32xf32>
    %cst_12 = arith.constant dense<0.000000e+00> : vector<8x32xf32>
    %10 = tpu.matmul %8, %9, %cst_12 {dimension_numbers = #tpu.dot_dimension_numbers<[1], [0], [0], [1], [0, 0, 1, 1], [], []>} : vector<8x64xf32>, vector<64x32xf32>, vector<8x32xf32> -> vector<8x32xf32>
    %c0_13 = arith.constant 0 : index
    %c0_14 = arith.constant 0 : index
    %11 = vector.load %arg4[%c0_13, %c0_14] : memref<1x32xf32, #tpu.memory_space<vmem>>, vector<1x32xf32>
    %12 = vector.broadcast %11 : vector<1x32xf32> to vector<8x32xf32>
    %13 = arith.addf %12, %7 : vector<8x32xf32>
    %14 = arith.addf %13, %10 : vector<8x32xf32>
    %cst_15 = arith.constant 0.000000e+00 : f32
    %15 = vector.broadcast %cst_15 : f32 to vector<8x32xf32>
    %16 = arith.cmpf oge, %14, %15 : vector<8x32xf32>
    %cst_16 = arith.constant 0.00999999977 : f32
    %17 = vector.broadcast %cst_16 : f32 to vector<8x32xf32>
    %18 = arith.mulf %17, %14 : vector<8x32xf32>
    %19 = arith.select %16, %14, %18 : vector<8x32xi1>, vector<8x32xf32>
    %c0_17 = arith.constant 0 : index
    %c0_18 = arith.constant 0 : index
    %20 = vector.load %arg7[%c0_17, %c0_18] : memref<8x32xf32, #tpu.memory_space<vmem>>, vector<8x32xf32>
    %cst_19 = arith.constant 0.000000e+00 : f32
    %21 = vector.broadcast %cst_19 : f32 to vector<8x32xf32>
    %22 = arith.cmpf ogt, %20, %21 : vector<8x32xf32>
    %cst_20 = arith.constant -1.000000e+30 : f32
    %23 = vector.broadcast %cst_20 : f32 to vector<8x32xf32>
    %24 = arith.select %22, %19, %23 : vector<8x32xi1>, vector<8x32xf32>
    %cst_21 = arith.constant dense<0xFF800000> : vector<8xf32>
    %25 = vector.multi_reduction <maximumf>, %24, %cst_21 [1] : vector<8x32xf32> to vector<8xf32>
    %26 = vector.shape_cast %25 : vector<8xf32> to vector<8x1xf32>
    %27 = vector.broadcast %26 : vector<8x1xf32> to vector<8x32xf32>
    %28 = arith.subf %24, %27 : vector<8x32xf32>
    %29 = math.exp %28 : vector<8x32xf32>
    %cst_22 = arith.constant dense<0.000000e+00> : vector<8x128xf32>
    %30 = tpu.matmul %29, %5, %cst_22 {dimension_numbers = #tpu.dot_dimension_numbers<[1], [0], [0], [1], [0, 0, 1, 1], [], []>} : vector<8x32xf32>, vector<32x128xf32>, vector<8x128xf32> -> vector<8x128xf32>
    %cst_23 = arith.constant dense<0.000000e+00> : vector<8x128xf32>
    %31 = tpu.matmul %29, %1, %cst_23 {dimension_numbers = #tpu.dot_dimension_numbers<[1], [0], [0], [1], [0, 0, 1, 1], [], []>} : vector<8x32xf32>, vector<32x128xf32>, vector<8x128xf32> -> vector<8x128xf32>
    %cst_24 = arith.constant 9.99999968E-21 : f32
    %32 = vector.broadcast %cst_24 : f32 to vector<8x128xf32>
    %33 = arith.maximumf %31, %32 : vector<8x128xf32>
    %34 = tpu.reciprocal %33 {approx = true} : vector<8x128xf32> -> vector<8x128xf32>
    %35 = arith.mulf %30, %34 : vector<8x128xf32>
    %c0_25 = arith.constant 0 : index
    %c0_26 = arith.constant 0 : index
    %36 = vector.load %arg9[%c0_25, %c0_26] : memref<8x128xf32, #tpu.memory_space<vmem>>, vector<8x128xf32>
    tpu.vector_store %arg9[%c0_25, %c0_26], %35 {strides = array<i32>} : memref<8x128xf32, #tpu.memory_space<vmem>>, vector<8x128xf32>,
    return
  }
  func.func @transform_0(%arg0: i32) -> (i32, i32) {
    %c0_i32 = arith.constant 0 : i32
    %c0_i32_0 = arith.constant 0 : i32
    %c0_i32_1 = arith.constant 0 : i32
    return %c0_i32, %c0_i32_0 : i32, i32
  }
  func.func @transform_1(%arg0: i32) -> (i32, i32) {
    %c0_i32 = arith.constant 0 : i32
    %c0_i32_0 = arith.constant 0 : i32
    %c0_i32_1 = arith.constant 0 : i32
    return %c0_i32, %c0_i32_0 : i32, i32
  }
  func.func @transform_2(%arg0: i32) -> (i32, i32) {
    %c0_i32 = arith.constant 0 : i32
    %c0_i32_0 = arith.constant 0 : i32
    %c0_i32_1 = arith.constant 0 : i32
    return %c0_i32, %c0_i32_0 : i32, i32
  }
  func.func @transform_3(%arg0: i32) -> (i32, i32) {
    %c0_i32 = arith.constant 0 : i32
    %c0_i32_0 = arith.constant 0 : i32
    %c0_i32_1 = arith.constant 0 : i32
    return %c0_i32, %c0_i32_0 : i32, i32
  }
  func.func @transform_4(%arg0: i32) -> (i32, i32) {
    %c0_i32 = arith.constant 0 : i32
    %c0_i32_0 = arith.constant 0 : i32
    %c0_i32_1 = arith.constant 0 : i32
    return %c0_i32, %c0_i32_0 : i32, i32
  }
  func.func @transform_5(%arg0: i32) -> (i32, i32) {
    %c0_i32 = arith.constant 0 : i32
    %c0_i32_0 = arith.constant 0 : i32
    return %arg0, %c0_i32 : i32, i32
  }
  func.func @transform_6(%arg0: i32) -> (i32, i32) {
    %c0_i32 = arith.constant 0 : i32
    %c0_i32_0 = arith.constant 0 : i32
    return %arg0, %c0_i32 : i32, i32
  }
  func.func @transform_7(%arg0: i32) -> (i32, i32) {
    %c0_i32 = arith.constant 0 : i32
    %c0_i32_0 = arith.constant 0 : i32
    %c0_i32_1 = arith.constant 0 : i32
    return %c0_i32, %c0_i32_0 : i32, i32
  }
  func.func @transform_8(%arg0: i32) -> (i32, i32) {
    %c0_i32 = arith.constant 0 : i32
    %c0_i32_0 = arith.constant 0 : i32
    return %arg0, %c0_i32 : i32, i32
  }
}

</mosaic_0001>

<llo_original>
// kernel: tpu_custom_call.1
$region0: #{tpu_custom_call.1}
  #allocation0 [shape = 'u32[]', space=smem, size = 0x4, offset = 0x4, fixed_abs, tag = 'smem constant byte address 0x4 - core index']
  #allocation1 [shape = 'u32[144,128]{1,0:T(1,128)}', space=vmem, size = 0x12000, scoped, tag = 'internal scratch']
  %s0 = inlined_call_operand.vmem [shape: f32[8,16], index: 0, kind: input, shape index: {}]
  %s1 = inlined_call_operand.vmem [shape: f32[16,128], index: 1, kind: input, shape index: {}]
  %s2 = inlined_call_operand.vmem [shape: f32[16,32], index: 2, kind: input, shape index: {}]
  %s3 = inlined_call_operand.vmem [shape: f32[1,32], index: 3, kind: input, shape index: {}]
  %s4 = inlined_call_operand.vmem [shape: f32[64,32], index: 4, kind: input, shape index: {}]
  %s5 = inlined_call_operand.vmem [shape: f32[8,64], index: 5, kind: input, shape index: {}]
  %s6 = inlined_call_operand.vmem [shape: f32[8,32], index: 6, kind: input, shape index: {}]
  %s7 = inlined_call_operand.vmem [shape: f32[32,128], index: 7, kind: input, shape index: {}]
  %s8 = inlined_call_operand.hbm [shape: f32[8,128], index: 8, kind: output, shape index: {}]
  %s9 = sld [smem:[#allocation0]]
  $region42: #{tpu_custom_call.1} parent=0
    _
  %s11 = ssub.s32 1, %s9
  %s12 = scalar_select 0, %s11, %s9
  $region1: #{tpu_custom_call.1} parent=0
    #allocation2 [shape = 'u8[4096]{0}', space=vmem, size = 0x1000, scoped, tag = 'output window, operand 0, single buffered']
    #allocation3 [shape = 's32[1]{0}', space=sflag, size = 0x4, scoped, tag = 'scoped memory for tpu_custom_call.1']
    %13 = vsyncpa [#allocation3], 0
    // Predicated region
    $region2: #{tpu_custom_call.1} parent=1 // pred_check
      _
    $region3: #{tpu_custom_call.1} parent=1 // pred_check_branch
      %15 = sbr.rel (0) target = $region5
    $region4: #{tpu_custom_call.1} parent=1 // pred_region
      _
    $region5: #{tpu_custom_call.1} parent=1 // pred_fallthru
      _
    // Predicated region
    $region6: #{tpu_custom_call.1} parent=1 // pred_check
      _
    $region7: #{tpu_custom_call.1} parent=1 // pred_check_branch
      %17 = sbr.rel (0) target = $region9
    $region8: #{tpu_custom_call.1} parent=1 // pred_region
      _
    $region9: #{tpu_custom_call.1} parent=1 // pred_fallthru
      _
    // Predicated region
    $region10: #{tpu_custom_call.1} parent=1 // pred_check
      _
    $region11: #{tpu_custom_call.1} parent=1 // pred_check_branch
      %19 = sbr.rel (0) target = $region13
    $region12: #{tpu_custom_call.1} parent=1 // pred_region
      _
    $region13: #{tpu_custom_call.1} parent=1 // pred_fallthru
      _
    // Predicated region
    $region14: #{tpu_custom_call.1} parent=1 // pred_check
      _
    $region15: #{tpu_custom_call.1} parent=1 // pred_check_branch
      %21 = sbr.rel (0) target = $region17
    $region16: #{tpu_custom_call.1} parent=1 // pred_region
      _
    $region17: #{tpu_custom_call.1} parent=1 // pred_fallthru
      _
    // Predicated region
    $region18: #{tpu_custom_call.1} parent=1 // pred_check
      _
    $region19: #{tpu_custom_call.1} parent=1 // pred_check_branch
      %23 = sbr.rel (0) target = $region21
    $region20: #{tpu_custom_call.1} parent=1 // pred_region
      _
    $region21: #{tpu_custom_call.1} parent=1 // pred_fallthru
      _
    // Predicated region
    $region22: #{tpu_custom_call.1} parent=1 // pred_check
      _
    $region23: #{tpu_custom_call.1} parent=1 // pred_check_branch
      %25 = sbr.rel (0) target = $region25
    $region24: #{tpu_custom_call.1} parent=1 // pred_region
      _
    $region25: #{tpu_custom_call.1} parent=1 // pred_fallthru
      _
    // Predicated region
    $region26: #{tpu_custom_call.1} parent=1 // pred_check
      _
    $region27: #{tpu_custom_call.1} parent=1 // pred_check_branch
      %27 = sbr.rel (0) target = $region29
    $region28: #{tpu_custom_call.1} parent=1 // pred_region
      _
    $region29: #{tpu_custom_call.1} parent=1 // pred_fallthru
      _
    // Predicated region
    $region30: #{tpu_custom_call.1} parent=1 // pred_check
      _
    $region31: #{tpu_custom_call.1} parent=1 // pred_check_branch
      %29 = sbr.rel (0) target = $region33
    $region32: #{tpu_custom_call.1} parent=1 // pred_region
      _
    $region33: #{tpu_custom_call.1} parent=1 // pred_fallthru
      _
    %v30 = vld [vmem:[%s0] sm:$0xff]
    %v31 = vld [vmem:[%s7] sm:$0xff]
    %v32 = vld [vmem:[%s7 + $0x8] sm:$0xff]
    %v33 = vld [vmem:[%s7 + $0x10] sm:$0xff]
    %v34 = vld [vmem:[%s7 + $0x18] sm:$0xff]
    %v35 = vld [vmem:[%s1] sm:$0xff]
    %v36 = vld [vmem:[%s1 + $0x8] sm:$0xff]
    %vm37 = vcmask 130048
    %v39 = vsel %vm37, %v30, 0
    %41 = vmatprep.subr.mxu0 0.0
    %42 = vmatpush1.msra.mxu0 0.0
    %43 = vmatprep.subr.mxu0 0.0
    %44 = vmatpush1.msra.mxu0 0.0
    %45 = vmatprep.subr.mxu0 0.0
    %46 = vmatpush1.msra.mxu0 0.0
    %47 = vmatprep.subr.mxu0 0.0
    %48 = vmatpush1.msra.mxu0 0.0
    %49 = vmatprep.subr.mxu0 0.0
    %50 = vmatpush1.msra.mxu0 0.0
    %51 = vmatprep.subr.mxu0 0.0
    %52 = vmatpush1.msra.mxu0 0.0
    %53 = vmatprep.subr.mxu0 0.0
    %54 = vmatpush1.msra.mxu0 0.0
    %55 = vmatprep.subr.mxu0 0.0
    %56 = vmatpush1.msra.mxu0 0.0
    %57 = vmatprep.subr.mxu0 0.0
    %58 = vmatpush1.msra.mxu0 0.0
    %59 = vmatprep.subr.mxu0 0.0
    %60 = vmatpush1.msra.mxu0 0.0
    %61 = vmatprep.subr.mxu0 0.0
    %62 = vmatpush1.msra.mxu0 0.0
    %63 = vmatprep.subr.mxu0 0.0
    %64 = vmatpush1.msra.mxu0 0.0
    %65 = vmatprep.subr.mxu0 0.0
    %66 = vmatpush1.msra.mxu0 0.0
    %67 = vmatprep.subr.mxu0 0.0
    %68 = vmatpush1.msra.mxu0 0.0
    %69 = vmatprep.subr.mxu0 0.0
    %70 = vmatpush1.msra.mxu0 %v36
    %71 = vmatprep.subr.mxu0 0.0
    %72 = vmatpush1.msra.mxu0 %v35
    %73 = vmatprep.subr.mxu0 0.0
    %74 = vmatpush2.msra.mxu0 0.0
    %75 = vmatprep.subr.mxu0 0.0
    %76 = vmatpush2.msra.mxu0 0.0
    %77 = vmatprep.subr.mxu0 0.0
    %78 = vmatpush2.msra.mxu0 0.0
    %79 = vmatprep.subr.mxu0 0.0
    %80 = vmatpush2.msra.mxu0 0.0
    %81 = vmatprep.subr.mxu0 0.0
    %82 = vmatpush2.msra.mxu0 0.0
    %83 = vmatprep.subr.mxu0 0.0
    %84 = vmatpush2.msra.mxu0 0.0
    %85 = vmatprep.subr.mxu0 0.0
    %86 = vmatpush2.msra.mxu0 0.0
    %87 = vmatprep.subr.mxu0 0.0
    %88 = vmatpush2.msra.mxu0 0.0
    %89 = vmatprep.subr.mxu0 0.0
    %90 = vmatpush2.msra.mxu0 0.0
    %91 = vmatprep.subr.mxu0 0.0
    %92 = vmatpush2.msra.mxu0 0.0
    %93 = vmatprep.subr.mxu0 0.0
    %94 = vmatpush2.msra.mxu0 0.0
    %95 = vmatprep.subr.mxu0 0.0
    %96 = vmatpush2.msra.mxu0 0.0
    %97 = vmatprep.subr.mxu0 0.0
    %98 = vmatpush2.msra.mxu0 0.0
    %99 = vmatprep.subr.mxu0 0.0
    %100 = vmatpush2.msra.mxu0 0.0
    %101 = vmatprep.subr.mxu0 0.0
    %102 = vmatpush2.msra.mxu0 0.0
    %103 = vmatprep.subr.mxu0 0.0
    %104 = vmatpush2.msra.mxu0 0.0
    %105 = vmatprep.mubr.f32.mxu0 0.0
    %106 = vmatmul.mubr.f32.gmra.mxu0 %v39
    %v107 = vpop.f32.mrf.mxu0
    %v108 = vadd.f32 0.0, %v107
    %v109 = vpop.f32.mrf.mxu0
    %110 = vdwg.mxu0
    %v111 = vmul.f32 %v108, %v31
    %v112 = vmul.f32 %v108, %v32
    %v113 = vmul.f32 %v108, %v33
    %v114 = vmul.f32 %v108, %v34
    %v115 = vld [vmem:[%s2] sm:$0xff]
    %v116 = vld [vmem:[%s2 + $0x8] sm:$0xff]
    %117 = vmatprep.subr.mxu0 0.0
    %118 = vmatpush1.msra.mxu0 0.0
    %119 = vmatprep.subr.mxu0 0.0
    %120 = vmatpush1.msra.mxu0 0.0
    %121 = vmatprep.subr.mxu0 0.0
    %122 = vmatpush1.msra.mxu0 0.0
    %123 = vmatprep.subr.mxu0 0.0
    %124 = vmatpush1.msra.mxu0 0.0
    %125 = vmatprep.subr.mxu0 0.0
    %126 = vmatpush1.msra.mxu0 0.0
    %127 = vmatprep.subr.mxu0 0.0
    %128 = vmatpush1.msra.mxu0 0.0
    %129 = vmatprep.subr.mxu0 0.0
    %130 = vmatpush1.msra.mxu0 0.0
    %131 = vmatprep.subr.mxu0 0.0
    %132 = vmatpush1.msra.mxu0 0.0
    %133 = vmatprep.subr.mxu0 0.0
    %134 = vmatpush1.msra.mxu0 0.0
    %135 = vmatprep.subr.mxu0 0.0
    %136 = vmatpush1.msra.mxu0 0.0
    %137 = vmatprep.subr.mxu0 0.0
    %138 = vmatpush1.msra.mxu0 0.0
    %139 = vmatprep.subr.mxu0 0.0
    %140 = vmatpush1.msra.mxu0 0.0
    %141 = vmatprep.subr.mxu0 0.0
    %142 = vmatpush1.msra.mxu0 0.0
    %143 = vmatprep.subr.mxu0 0.0
    %144 = vmatpush1.msra.mxu0 0.0
    %145 = vmatprep.subr.mxu0 0.0
    %146 = vmatpush1.msra.mxu0 %v116
    %147 = vmatprep.subr.mxu0 0.0
    %148 = vmatpush1.msra.mxu0 %v115
    %149 = vmatprep.subr.mxu0 0.0
    %150 = vmatpush2.msra.mxu0 0.0
    %151 = vmatprep.subr.mxu0 0.0
    %152 = vmatpush2.msra.mxu0 0.0
    %153 = vmatprep.subr.mxu0 0.0
    %154 = vmatpush2.msra.mxu0 0.0
    %155 = vmatprep.subr.mxu0 0.0
    %156 = vmatpush2.msra.mxu0 0.0
    %157 = vmatprep.subr.mxu0 0.0
    %158 = vmatpush2.msra.mxu0 0.0
    %159 = vmatprep.subr.mxu0 0.0
    %160 = vmatpush2.msra.mxu0 0.0
    %161 = vmatprep.subr.mxu0 0.0
    %162 = vmatpush2.msra.mxu0 0.0
    %163 = vmatprep.subr.mxu0 0.0
    %164 = vmatpush2.msra.mxu0 0.0
    %165 = vmatprep.subr.mxu0 0.0
    %166 = vmatpush2.msra.mxu0 0.0
    %167 = vmatprep.subr.mxu0 0.0
    %168 = vmatpush2.msra.mxu0 0.0
    %169 = vmatprep.subr.mxu0 0.0
    %170 = vmatpush2.msra.mxu0 0.0
    %171 = vmatprep.subr.mxu0 0.0
    %172 = vmatpush2.msra.mxu0 0.0
    %173 = vmatprep.subr.mxu0 0.0
    %174 = vmatpush2.msra.mxu0 0.0
    %175 = vmatprep.subr.mxu0 0.0
    %176 = vmatpush2.msra.mxu0 0.0
    %177 = vmatprep.subr.mxu0 0.0
    %178 = vmatpush2.msra.mxu0 0.0
    %179 = vmatprep.subr.mxu0 0.0
    %180 = vmatpush2.msra.mxu0 0.0
    %181 = vmatprep.mubr.f32.mxu0 0.0
    %182 = vmatmul.mubr.f32.gmra.mxu0 %v39
    %v183 = vpop.f32.mrf.mxu0
    %v184 = vadd.f32 0.0, %v183
    %v185 = vpop.f32.mrf.mxu0
    %186 = vdwg.mxu0
    %v187 = vld [vmem:[%s5] sm:$0xff]
    %v188 = vld [vmem:[%s4] sm:$0xff]
    %v189 = vld [vmem:[%s4 + $0x8] sm:$0xff]
    %v190 = vld [vmem:[%s4 + $0x10] sm:$0xff]
    %v191 = vld [vmem:[%s4 + $0x18] sm:$0xff]
    %v192 = vld [vmem:[%s4 + $0x20] sm:$0xff]
    %v193 = vld [vmem:[%s4 + $0x28] sm:$0xff]
    %v194 = vld [vmem:[%s4 + $0x30] sm:$0xff]
    %v195 = vld [vmem:[%s4 + $0x38] sm:$0xff]
    %vm196 = vcmask 523264
    %v198 = vsel %vm196, %v187, 0
    %200 = vmatprep.subr.mxu0 0.0
    %201 = vmatpush1.msra.mxu0 0.0
    %202 = vmatprep.subr.mxu0 0.0
    %203 = vmatpush1.msra.mxu0 0.0
    %204 = vmatprep.subr.mxu0 0.0
    %205 = vmatpush1.msra.mxu0 0.0
    %206 = vmatprep.subr.mxu0 0.0
    %207 = vmatpush1.msra.mxu0 0.0
    %208 = vmatprep.subr.mxu0 0.0
    %209 = vmatpush1.msra.mxu0 0.0
    %210 = vmatprep.subr.mxu0 0.0
    %211 = vmatpush1.msra.mxu0 0.0
    %212 = vmatprep.subr.mxu0 0.0
    %213 = vmatpush1.msra.mxu0 0.0
    %214 = vmatprep.subr.mxu0 0.0
    %215 = vmatpush1.msra.mxu0 0.0
    %216 = vmatprep.subr.mxu0 0.0
    %217 = vmatpush1.msra.mxu0 %v195
    %218 = vmatprep.subr.mxu0 0.0
    %219 = vmatpush1.msra.mxu0 %v194
    %220 = vmatprep.subr.mxu0 0.0
    %221 = vmatpush1.msra.mxu0 %v193
    %222 = vmatprep.subr.mxu0 0.0
    %223 = vmatpush1.msra.mxu0 %v192
    %224 = vmatprep.subr.mxu0 0.0
    %225 = vmatpush1.msra.mxu0 %v191
    %226 = vmatprep.subr.mxu0 0.0
    %227 = vmatpush1.msra.mxu0 %v190
    %228 = vmatprep.subr.mxu0 0.0
    %229 = vmatpush1.msra.mxu0 %v189
    %230 = vmatprep.subr.mxu0 0.0
    %231 = vmatpush1.msra.mxu0 %v188
    %232 = vmatprep.subr.mxu0 0.0
    %233 = vmatpush2.msra.mxu0 0.0
    %234 = vmatprep.subr.mxu0 0.0
    %235 = vmatpush2.msra.mxu0 0.0
    %236 = vmatprep.subr.mxu0 0.0
    %237 = vmatpush2.msra.mxu0 0.0
    %238 = vmatprep.subr.mxu0 0.0
    %239 = vmatpush2.msra.mxu0 0.0
    %240 = vmatprep.subr.mxu0 0.0
    %241 = vmatpush2.msra.mxu0 0.0
    %242 = vmatprep.subr.mxu0 0.0
    %243 = vmatpush2.msra.mxu0 0.0
    %244 = vmatprep.subr.mxu0 0.0
    %245 = vmatpush2.msra.mxu0 0.0
    %246 = vmatprep.subr.mxu0 0.0
    %247 = vmatpush2.msra.mxu0 0.0
    %248 = vmatprep.subr.mxu0 0.0
    %249 = vmatpush2.msra.mxu0 0.0
    %250 = vmatprep.subr.mxu0 0.0
    %251 = vmatpush2.msra.mxu0 0.0
    %252 = vmatprep.subr.mxu0 0.0
    %253 = vmatpush2.msra.mxu0 0.0
    %254 = vmatprep.subr.mxu0 0.0
    %255 = vmatpush2.msra.mxu0 0.0
    %256 = vmatprep.subr.mxu0 0.0
    %257 = vmatpush2.msra.mxu0 0.0
    %258 = vmatprep.subr.mxu0 0.0
    %259 = vmatpush2.msra.mxu0 0.0
    %260 = vmatprep.subr.mxu0 0.0
    %261 = vmatpush2.msra.mxu0 0.0
    %262 = vmatprep.subr.mxu0 0.0
    %263 = vmatpush2.msra.mxu0 0.0
    %264 = vmatprep.mubr.f32.mxu0 0.0
    %265 = vmatmul.mubr.f32.gmra.mxu0 %v198
    %v266 = vpop.f32.mrf.mxu0
    %v267 = vadd.f32 0.0, %v266
    %v268 = vpop.f32.mrf.mxu0
    %269 = vdwg.mxu0
    %v270 = vld [vmem:[%s3] sm:$0x1]
    %v272 = vlaneseq
    %v273 = vshrl.u32 %v272, 7
    %v274 = vsub.s32 0, %v273
    %v275 = vrot.slane %v270, %v274
    %v277 = vadd.f32 %v275, %v184
    %v278 = vadd.f32 %v277, %v267
    %vm279 = vcmp.ge.f32.partialorder %v278, 0.0
    %v280 = vmul.f32 %v278, 0.01
    %v281 = vsel %vm279, %v278, %v280
    %v282 = vld [vmem:[%s6] sm:$0xff]
    %vm283 = vcmp.gt.f32.partialorder %v282, 0.0
    %v284 = vsel %vm283, %v281, -1e+30
    %vm285 = vcmask 261120
    %v286 = vsel %vm285, %v284, -inf
    %287 = vmax.xlane.f32.xlu0 %v286
    %v288 = vpop.xlane.xlu0 %287
    %v289 = vsub.f32 %v284, %v288
    %v290 = vmul.f32 %v289, 1.442695
    %v291 = vpow.pop %v290
    %v293 = vsel %vm285, %v291, 0
    %295 = vmatprep.subr.mxu0 0.0
    %296 = vmatpush1.msra.mxu0 0.0
    %297 = vmatprep.subr.mxu0 0.0
    %298 = vmatpush1.msra.mxu0 0.0
    %299 = vmatprep.subr.mxu0 0.0
    %300 = vmatpush1.msra.mxu0 0.0
    %301 = vmatprep.subr.mxu0 0.0
    %302 = vmatpush1.msra.mxu0 0.0
    %303 = vmatprep.subr.mxu0 0.0
    %304 = vmatpush1.msra.mxu0 0.0
    %305 = vmatprep.subr.mxu0 0.0
    %306 = vmatpush1.msra.mxu0 0.0
    %307 = vmatprep.subr.mxu0 0.0
    %308 = vmatpush1.msra.mxu0 0.0
    %309 = vmatprep.subr.mxu0 0.0
    %310 = vmatpush1.msra.mxu0 0.0
    %311 = vmatprep.subr.mxu0 0.0
    %312 = vmatpush1.msra.mxu0 0.0
    %313 = vmatprep.subr.mxu0 0.0
    %314 = vmatpush1.msra.mxu0 0.0
    %315 = vmatprep.subr.mxu0 0.0
    %316 = vmatpush1.msra.mxu0 0.0
    %317 = vmatprep.subr.mxu0 0.0
    %318 = vmatpush1.msra.mxu0 0.0
    %319 = vmatprep.subr.mxu0 0.0
    %320 = vmatpush1.msra.mxu0 %v114
    %321 = vmatprep.subr.mxu0 0.0
    %322 = vmatpush1.msra.mxu0 %v113
    %323 = vmatprep.subr.mxu0 0.0
    %324 = vmatpush1.msra.mxu0 %v112
    %325 = vmatprep.subr.mxu0 0.0
    %326 = vmatpush1.msra.mxu0 %v111
    %327 = vmatprep.subr.mxu0 0.0
    %328 = vmatpush2.msra.mxu0 0.0
    %329 = vmatprep.subr.mxu0 0.0
    %330 = vmatpush2.msra.mxu0 0.0
    %331 = vmatprep.subr.mxu0 0.0
    %332 = vmatpush2.msra.mxu0 0.0
    %333 = vmatprep.subr.mxu0 0.0
    %334 = vmatpush2.msra.mxu0 0.0
    %335 = vmatprep.subr.mxu0 0.0
    %336 = vmatpush2.msra.mxu0 0.0
    %337 = vmatprep.subr.mxu0 0.0
    %338 = vmatpush2.msra.mxu0 0.0
    %339 = vmatprep.subr.mxu0 0.0
    %340 = vmatpush2.msra.mxu0 0.0
    %341 = vmatprep.subr.mxu0 0.0
    %342 = vmatpush2.msra.mxu0 0.0
    %343 = vmatprep.subr.mxu0 0.0
    %344 = vmatpush2.msra.mxu0 0.0
    %345 = vmatprep.subr.mxu0 0.0
    %346 = vmatpush2.msra.mxu0 0.0
    %347 = vmatprep.subr.mxu0 0.0
    %348 = vmatpush2.msra.mxu0 0.0
    %349 = vmatprep.subr.mxu0 0.0
    %350 = vmatpush2.msra.mxu0 0.0
    %351 = vmatprep.subr.mxu0 0.0
    %352 = vmatpush2.msra.mxu0 0.0
    %353 = vmatprep.subr.mxu0 0.0
    %354 = vmatpush2.msra.mxu0 0.0
    %355 = vmatprep.subr.mxu0 0.0
    %356 = vmatpush2.msra.mxu0 0.0
    %357 = vmatprep.subr.mxu0 0.0
    %358 = vmatpush2.msra.mxu0 0.0
    %359 = vmatprep.mubr.f32.mxu0 0.0
    %360 = vmatmul.mubr.f32.gmra.mxu0 %v293
    %v361 = vpop.f32.mrf.mxu0
    %v362 = vadd.f32 0.0, %v361
    %v363 = vpop.f32.mrf.mxu0
    %364 = vdwg.mxu0
    %365 = vmatprep.subr.mxu0 0.0
    %366 = vmatpush1.msra.mxu0 0.0
    %367 = vmatprep.subr.mxu0 0.0
    %368 = vmatpush1.msra.mxu0 0.0
    %369 = vmatprep.subr.mxu0 0.0
    %370 = vmatpush1.msra.mxu0 0.0
    %371 = vmatprep.subr.mxu0 0.0
    %372 = vmatpush1.msra.mxu0 0.0
    %373 = vmatprep.subr.mxu0 0.0
    %374 = vmatpush1.msra.mxu0 0.0
    %375 = vmatprep.subr.mxu0 0.0
    %376 = vmatpush1.msra.mxu0 0.0
    %377 = vmatprep.subr.mxu0 0.0
    %378 = vmatpush1.msra.mxu0 0.0
    %379 = vmatprep.subr.mxu0 0.0
    %380 = vmatpush1.msra.mxu0 0.0
    %381 = vmatprep.subr.mxu0 0.0
    %382 = vmatpush1.msra.mxu0 0.0
    %383 = vmatprep.subr.mxu0 0.0
    %384 = vmatpush1.msra.mxu0 0.0
    %385 = vmatprep.subr.mxu0 0.0
    %386 = vmatpush1.msra.mxu0 0.0
    %387 = vmatprep.subr.mxu0 0.0
    %388 = vmatpush1.msra.mxu0 0.0
    %389 = vmatprep.subr.mxu0 0.0
    %390 = vmatpush1.msra.mxu0 %v34
    %391 = vmatprep.subr.mxu0 0.0
    %392 = vmatpush1.msra.mxu0 %v33
    %393 = vmatprep.subr.mxu0 0.0
    %394 = vmatpush1.msra.mxu0 %v32
    %395 = vmatprep.subr.mxu0 0.0
    %396 = vmatpush1.msra.mxu0 %v31
    %397 = vmatprep.subr.mxu0 0.0
    %398 = vmatpush2.msra.mxu0 0.0
    %399 = vmatprep.subr.mxu0 0.0
    %400 = vmatpush2.msra.mxu0 0.0
    %401 = vmatprep.subr.mxu0 0.0
    %402 = vmatpush2.msra.mxu0 0.0
    %403 = vmatprep.subr.mxu0 0.0
    %404 = vmatpush2.msra.mxu0 0.0
    %405 = vmatprep.subr.mxu0 0.0
    %406 = vmatpush2.msra.mxu0 0.0
    %407 = vmatprep.subr.mxu0 0.0
    %408 = vmatpush2.msra.mxu0 0.0
    %409 = vmatprep.subr.mxu0 0.0
    %410 = vmatpush2.msra.mxu0 0.0
    %411 = vmatprep.subr.mxu0 0.0
    %412 = vmatpush2.msra.mxu0 0.0
    %413 = vmatprep.subr.mxu0 0.0
    %414 = vmatpush2.msra.mxu0 0.0
    %415 = vmatprep.subr.mxu0 0.0
    %416 = vmatpush2.msra.mxu0 0.0
    %417 = vmatprep.subr.mxu0 0.0
    %418 = vmatpush2.msra.mxu0 0.0
    %419 = vmatprep.subr.mxu0 0.0
    %420 = vmatpush2.msra.mxu0 0.0
    %421 = vmatprep.subr.mxu0 0.0
    %422 = vmatpush2.msra.mxu0 0.0
    %423 = vmatprep.subr.mxu0 0.0
    %424 = vmatpush2.msra.mxu0 0.0
    %425 = vmatprep.subr.mxu0 0.0
    %426 = vmatpush2.msra.mxu0 0.0
    %427 = vmatprep.subr.mxu0 0.0
    %428 = vmatpush2.msra.mxu0 0.0
    %429 = vmatprep.mubr.f32.mxu0 0.0
    %430 = vmatmul.mubr.f32.gmra.mxu0 %v293
    %v431 = vpop.f32.mrf.mxu0
    %v432 = vadd.f32 0.0, %v431
    %v433 = vpop.f32.mrf.mxu0
    %434 = vdwg.mxu0
    %v435 = vmax.f32 %v432, 1e-20
    %v436 = vrcp.pop %v435
    %v437 = vmul.f32 %v362, %v436
    %438 = vst [vmem:[#allocation2] sm:$0xff] %v437
    // Predicated region
    $region34: #{tpu_custom_call.1} parent=1 // pred_check
      _
    $region35: #{tpu_custom_call.1} parent=1 // pred_check_branch
      %440 = sbr.rel (0) target = $region37
    $region36: #{tpu_custom_call.1} parent=1 // pred_region
      %s442 = ssub.s32 128, 128
      %443 = vsyncadd [#allocation3], %s442
      %s445 = sshll.u32 [#allocation2], 4
      %s446 = int_to_ptr.vmem [resolvable:$true] %s445
      %448 = dma.vmem_to_hbm [thread:$0]  %s446, 128, %s8, [#allocation3]
    $region37: #{tpu_custom_call.1} parent=1 // pred_fallthru
      _
    // Predicated region
    $region38: #{tpu_custom_call.1} parent=1 // pred_check
      _
    $region39: #{tpu_custom_call.1} parent=1 // pred_check_branch
      %450 = sbr.rel (0) target = $region41
    $region40: #{tpu_custom_call.1} parent=1 // pred_region
      %451 = dma.done [#allocation3], 128
    $region41: #{tpu_custom_call.1} parent=1 // pred_fallthru
      _
    %452 = vsyncpa [#allocation3], 1

</llo_original>
